<compile_context>
chip_gen: v6e
topology: v6e:2x2x1
jax: 0.10.0
libtpu: 0.0.40
codegen_flags: <defaults>
</compile_context>

<pallas_src>
import functools

import jax
import jax.numpy as jnp
from jax.experimental import pallas as pl
from jax.experimental.pallas import tpu as pltpu


def _softplus(x):
    # Numerically-stable softplus, matches F.softplus (beta=1); stays in f32.
    return jnp.maximum(x, 0.0) + jnp.log1p(jnp.exp(-jnp.abs(x)))


def _pad128(a):
    """Pad the last dim of a 2-D array up to a multiple of 128 lanes (zeros)."""
    w = a.shape[-1]
    pw = ((w + 127) // 128) * 128
    if pw == w:
        return a
    return jnp.pad(a, ((0, 0), (0, pw - w)))


def _make_kernel(feature_indices, hidden_size, n_steps, w_off, b_off):
    """Build the fused forward kernel.

    `feature_indices`: static tuple of (start, end) softmax segments.
    `w_off` / `b_off`: static {name: (lane_offset, width)} into the weight / bias slabs.
    """
    H = int(hidden_size)
    n_steps = int(n_steps)
    feature_indices = tuple((int(s), int(e)) for (s, e) in feature_indices)

    def kernel(x_ref, y_ref, emb_ref, w1_ref, wslab_ref, bslab_ref, out_ref):
        TB = x_ref.shape[0]

        def wseg(name):
            off, width = w_off[name]
            return wslab_ref[:, off:off + width]          # static slice: zero-cost view

        def bseg(name):
            off, width = b_off[name]
            return bslab_ref[:, off:off + width]

        def linear(v, w, b):
            # Activations cast to the (possibly bf16) weight dtype right before the
            # MXU; accumulation and all elementwise math stay f32.
            return jnp.dot(v.astype(w.dtype), w,
                           preferred_element_type=jnp.float32) + b

        x = x_ref[...]                                    # (TB, in_size) f32
        yv = y_ref[...]                                   # (TB, 1)       int32

        # --- gamma gates: one-hot MXU gather from the resident f32 embedding ---
        # onehot is exact (0/1), emb stays f32 -> the gather is exact; this replaces
        # the O(n_steps) compare/select VALU loop and rides the otherwise-idle MXU.
        step_ids = jax.lax.broadcasted_iota(jnp.int32, (TB, n_steps), 1)
        onehot = (step_ids == yv).astype(jnp.float32)     # (TB, n_steps)
        g = jnp.dot(onehot, emb_ref[...], preferred_element_type=jnp.float32)
        g1 = g[:, 0:H]
        g2 = g[:, H:2 * H]
        g3 = g[:, 2 * H:3 * H]

        # --- conditional trunk: softplus(gamma * (x @ W + b)), x3 ---
        h = _softplus(g1 * linear(x, w1_ref[...], bseg("b1")))
        h = _softplus(g2 * linear(h, wseg("w2"), bseg("b2")))
        h = _softplus(g3 * linear(h, wseg("w3"), bseg("b3")))

        # --- fused first layer of both heads (lin_d1 | lin_c1), shared input h ---
        dc = jnp.maximum(linear(h, wseg("wdc1"), bseg("bdc1")), 0.0)
        d = dc[:, 0:H]
        c = dc[:, H:2 * H]

        # --- discrete head -> logits ---
        d = linear(d, wseg("wd2"), bseg("bd2"))
        d = linear(d, wseg("wd3"), bseg("bd3"))           # (TB, Dd) f32

        # --- masked segmented softmax over the whole logits tile ---
        Dd = d.shape[-1]
        col = jax.lax.broadcasted_iota(jnp.int32, (1, Dd), 1)
        masks = [(col >= s) & (col < e) for (s, e) in feature_indices]

        covering = (
            feature_indices[0][0] == 0
            and all(feature_indices[i][0] == feature_indices[i - 1][1]
                    for i in range(1, len(feature_indices)))
            and feature_indices[-1][1] == Dd)

        # per-segment max, broadcast back to the segment's columns
        m_full = sum(
            jnp.where(m,
                      jnp.max(jnp.where(m, d, -jnp.inf), axis=1, keepdims=True),
                      0.0)
            for m in masks)
        if covering:
            ex = jnp.exp(d - m_full)
        else:
            # mask uncovered columns BEFORE exp so no inf*0 -> NaN is ever produced
            covered = masks[0]
            for m in masks[1:]:
                covered = covered | m
            ex = jnp.where(covered, jnp.exp(jnp.where(covered, d - m_full, 0.0)), 0.0)

        # one approx reciprocal per segment (EUP slot), broadcast-multiply back
        inv_full = sum(
            jnp.where(m,
                      pl.reciprocal(
                          jnp.sum(jnp.where(m, ex, 0.0), axis=1, keepdims=True),
                          approx=True),
                      0.0)
            for m in masks)
        d_soft = ex * inv_full

        if covering:
            d_out = d_soft
        else:
            d_out = jnp.concatenate(
                [d_soft[:, s:e] for (s, e) in feature_indices], axis=1)

        # --- continuous head ---
        c = jnp.maximum(linear(c, wseg("wc2"), bseg("bc2")), 0.0)
        c = jnp.maximum(linear(c, wseg("wc3"), bseg("bc3")), 0.0)
        c = linear(c, wseg("wc4"), bseg("bc4"))
        c = linear(c, wseg("wc5"), bseg("bc5"))

        # --- single lane-contiguous output slab: [continuous | discrete] ---
        out_ref[...] = jnp.concatenate([c, d_out], axis=1).astype(out_ref.dtype)

    return kernel


def init_params(key, n_steps, hidden_size, continuous_size, discrete_size):
    """Deterministic synthetic parameters (shapes match the PyTorch module).
    Linear weights are stored as (in, out); embeddings as (n_steps, hidden)."""
    in_size = continuous_size + discrete_size

    def lin(k, n_in, n_out):
        kw, kb = jax.random.split(k)
        bound = 1.0 / jnp.sqrt(jnp.float32(n_in))
        w = jax.random.uniform(kw, (n_in, n_out), jnp.float32, -bound, bound)
        b = jax.random.uniform(kb, (1, n_out), jnp.float32, -bound, bound)
        return w, b

    keys = jax.random.split(key, 14)
    params = {}
    params["w1"], params["b1"] = lin(keys[0], in_size, hidden_size)
    params["w2"], params["b2"] = lin(keys[1], hidden_size, hidden_size)
    params["w3"], params["b3"] = lin(keys[2], hidden_size, hidden_size)
    params["wd1"], params["bd1"] = lin(keys[3], hidden_size, hidden_size)
    params["wd2"], params["bd2"] = lin(keys[4], hidden_size, hidden_size)
    params["wd3"], params["bd3"] = lin(keys[5], hidden_size, discrete_size)
    params["wc1"], params["bc1"] = lin(keys[6], hidden_size, hidden_size)
    params["wc2"], params["bc2"] = lin(keys[7], hidden_size, hidden_size)
    params["wc3"], params["bc3"] = lin(keys[8], hidden_size, hidden_size)
    params["wc4"], params["bc4"] = lin(keys[9], hidden_size, hidden_size)
    params["wc5"], params["bc5"] = lin(keys[10], hidden_size, continuous_size)
    # embedding weights ~ uniform_() in [0, 1), like the PyTorch module
    params["embed1"] = jax.random.uniform(keys[11], (n_steps, hidden_size), jnp.float32)
    params["embed2"] = jax.random.uniform(keys[12], (n_steps, hidden_size), jnp.float32)
    params["embed3"] = jax.random.uniform(keys[13], (n_steps, hidden_size), jnp.float32)
    return params


@functools.partial(jax.jit,
                   static_argnames=("feature_indices", "matmul_dtype", "block_rows"))
def conditional_tabular_forward(params, x_c, x_d, y, feature_indices,
                                matmul_dtype=jnp.bfloat16, block_rows=None):
    B = x_c.shape[0]
    H = params["w2"].shape[0]
    Dc = params["wc5"].shape[1]
    n_steps = params["embed1"].shape[0]
    out_d_width = sum(int(e) - int(s) for (s, e) in feature_indices)
    out_width = Dc + out_d_width

    # Batch tile: weights are VMEM-resident; streamed per-step footprint is tiny, so
    # take the whole batch (up to 2048 rows) per grid step to amortize the ~0.35us
    # per-step pipeline overhead.  block_rows must be a multiple of 8 or equal to B.
    if block_rows is None:
        block_rows = B if B <= 2048 else 2048
    TB = int(block_rows)
    grid = (pl.cdiv(B, TB),)

    # --- glue: concat features, reshape timestep, stack embeddings, build slabs ---
    x = jnp.concatenate([x_c, x_d], axis=1).astype(jnp.float32)
    y2d = y.reshape(B, 1).astype(jnp.int32)
    # stacked embedding table stays f32 so the one-hot MXU gather is exact
    emb = jnp.concatenate(
        [params["embed1"], params["embed2"], params["embed3"]], axis=1
    ).astype(jnp.float32)                                    # (n_steps, 3H), resident
    w1 = params["w1"].astype(matmul_dtype)                   # (in_size, H), resident
    wdc1 = jnp.concatenate([params["wd1"], params["wc1"]], axis=1)   # fused head-1
    bdc1 = jnp.concatenate([params["bd1"], params["bc1"]], axis=1)

    # Consolidate all H-row weights into ONE lane-dense slab (each segment padded to a
    # 128-lane boundary) and all biases into ONE row; the kernel takes static slices.
    w_parts = [("w2", params["w2"]), ("w3", params["w3"]), ("wdc1", wdc1),
               ("wd2", params["wd2"]), ("wd3", params["wd3"]),
               ("wc2", params["wc2"]), ("wc3", params["wc3"]),
               ("wc4", params["wc4"]), ("wc5", params["wc5"])]
    b_parts = [("b1", params["b1"]), ("b2", params["b2"]), ("b3", params["b3"]),
               ("bdc1", bdc1), ("bd2", params["bd2"]), ("bd3", params["bd3"]),
               ("bc2", params["bc2"]), ("bc3", params["bc3"]),
               ("bc4", params["bc4"]), ("bc5", params["bc5"])]

    w_off, w_cols, off = {}, [], 0
    for name, a in w_parts:
        w_off[name] = (off, a.shape[1])
        ap = _pad128(a)
        w_cols.append(ap)
        off += ap.shape[1]
    wslab = jnp.concatenate(w_cols, axis=1).astype(matmul_dtype)     # (H, N*128)

    b_off, b_cols, off = {}, [], 0
    for name, a in b_parts:
        b_off[name] = (off, a.shape[1])
        ap = _pad128(a)
        b_cols.append(ap)
        off += ap.shape[1]
    bslab = jnp.concatenate(b_cols, axis=1).astype(jnp.float32)      # (1, N*128)

    kernel = _make_kernel(feature_indices, H, n_steps, w_off, b_off)

    in_specs = [
        pl.BlockSpec((TB, x.shape[1]), lambda i: (i, 0)),   # streamed activations
        pl.BlockSpec((TB, 1), lambda i: (i, 0)),            # streamed timesteps
        pl.BlockSpec(emb.shape, lambda i: (0, 0)),          # VMEM-resident
        pl.BlockSpec(w1.shape, lambda i: (0, 0)),           # VMEM-resident
        pl.BlockSpec(wslab.shape, lambda i: (0, 0)),        # VMEM-resident
        pl.BlockSpec(bslab.shape, lambda i: (0, 0)),        # VMEM-resident
    ]
    out_spec = pl.BlockSpec((TB, out_width), lambda i: (i, 0))

    out = pl.pallas_call(
        kernel,
        grid=grid,
        in_specs=in_specs,
        out_specs=out_spec,
        out_shape=jax.ShapeDtypeStruct((B, out_width), jnp.float32),
        compiler_params=pltpu.CompilerParams(
            dimension_semantics=("parallel",)),              # megacore sharding on v7x
    )(x, y2d, emb, w1, wslab, bslab)

    return out[:, :Dc], out[:, Dc:]


def reference_forward(params, x_c, x_d, y, feature_indices):
    """Pure-JAX reference mirroring the PyTorch forward."""
    x = jnp.concatenate([x_c, x_d], axis=1)

    def cond_lin(v, w, b, emb):
        return emb[y] * (v @ w + b)

    h = jax.nn.softplus(cond_lin(x, params["w1"], params["b1"], params["embed1"]))
    h = jax.nn.softplus(cond_lin(h, params["w2"], params["b2"], params["embed2"]))
    h = jax.nn.softplus(cond_lin(h, params["w3"], params["b3"], params["embed3"]))

    d = jax.nn.relu(h @ params["wd1"] + params["bd1"])
    d = d @ params["wd2"] + params["bd2"]
    d = d @ params["wd3"] + params["bd3"]
    segs = [jax.nn.softmax(d[:, s:e], axis=1) for (s, e) in feature_indices]
    d = jnp.concatenate(segs, axis=1)

    c = jax.nn.relu(h @ params["wc1"] + params["bc1"])
    c = jax.nn.relu(c @ params["wc2"] + params["bc2"])
    c = jax.nn.relu(c @ params["wc3"] + params["bc3"])
    c = c @ params["wc4"] + params["bc4"]
    c = c @ params["wc5"] + params["bc5"]
    return c, d


if __name__ == "__main__":
    key = jax.random.PRNGKey(0)

    # small shapes consistent with the module
    B = 8
    n_steps = 10
    hidden_size = 32
    continuous_size = 3
    discrete_size = 5
    # two one-hot discrete features: widths 2 and 3
    feature_indices = ((0, 2), (2, 5))

    k_params, k_xc, k_xd, k_y = jax.random.split(key, 4)
    params = init_params(k_params, n_steps, hidden_size, continuous_size, discrete_size)
    x_c = jax.random.normal(k_xc, (B, continuous_size), jnp.float32)
    x_d = jax.random.normal(k_xd, (B, discrete_size), jnp.float32)
    y = jax.random.randint(k_y, (B,), 0, n_steps, jnp.int32)

    ref_c, ref_d = reference_forward(params, x_c, x_d, y, feature_indices)

    # --- default path: bf16 MXU inputs (MXU-native on v5e/v6e/v7x), f32 everything else ---
    out_c, out_d = conditional_tabular_forward(params, x_c, x_d, y, feature_indices)
    jax.block_until_ready((out_c, out_d))
    assert out_c.shape == (B, continuous_size)
    assert out_d.shape == (B, discrete_size)
    assert jnp.allclose(out_c, ref_c, atol=1e-1, rtol=1e-1)
    assert jnp.allclose(out_d, ref_d, atol=1e-1, rtol=1e-1)

    # --- f32 MXU path: tight check (out_d tolerance loosened only for approx reciprocal) ---
    out_c32, out_d32 = conditional_tabular_forward(
        params, x_c, x_d, y, feature_indices, matmul_dtype=jnp.float32)
    jax.block_until_ready((out_c32, out_d32))
    assert jnp.allclose(out_c32, ref_c, atol=1e-4, rtol=1e-4)
    assert jnp.allclose(out_d32, ref_d, atol=3e-3, rtol=3e-3)

    # --- multi-tile grid (3 batch tiles of 8 rows) to exercise the pipelined path ---
    B2 = 24
    k_xc2, k_xd2, k_y2 = jax.random.split(jax.random.PRNGKey(1), 3)
    x_c2 = jax.random.normal(k_xc2, (B2, continuous_size), jnp.float32)
    x_d2 = jax.random.normal(k_xd2, (B2, discrete_size), jnp.float32)
    y2 = jax.random.randint(k_y2, (B2,), 0, n_steps, jnp.int32)
    ref_c2, ref_d2 = reference_forward(params, x_c2, x_d2, y2, feature_indices)
    out_c2, out_d2 = conditional_tabular_forward(
        params, x_c2, x_d2, y2, feature_indices,
        matmul_dtype=jnp.float32, block_rows=8)
    jax.block_until_ready((out_c2, out_d2))
    assert jnp.allclose(out_c2, ref_c2, atol=1e-4, rtol=1e-4)
    assert jnp.allclose(out_d2, ref_d2, atol=3e-3, rtol=3e-3)

    # --- partial last tile (24 rows, TB=16 -> second tile half-padded) ---
    out_c3, out_d3 = conditional_tabular_forward(
        params, x_c2, x_d2, y2, feature_indices,
        matmul_dtype=jnp.float32, block_rows=16)
    jax.block_until_ready((out_c3, out_d3))
    assert jnp.allclose(out_c3, ref_c2, atol=1e-4, rtol=1e-4)
    assert jnp.allclose(out_d3, ref_d2, atol=3e-3, rtol=3e-3)

    print("KERNEL_OK")
</pallas_src>

<mosaic_0001>
module attributes {stable_mosaic.version = 11 : i64} {
  func.func @kernel(%arg0: i32, %arg1: memref<8x8xf32, #tpu.memory_space<vmem>>, %arg2: memref<8x1xi32, #tpu.memory_space<vmem>>, %arg3: memref<10x96xf32, #tpu.memory_space<vmem>>, %arg4: memref<8x32xbf16, #tpu.memory_space<vmem>>, %arg5: memref<32x1152xbf16, #tpu.memory_space<vmem>>, %arg6: memref<1x1280xf32, #tpu.memory_space<vmem>>, %arg7: memref<8x8xf32, #tpu.memory_space<vmem>>) attributes {dimension_semantics = [#tpu.dimension_semantics<parallel>], iteration_bounds = array<i64: 1>, scalar_prefetch = 0 : i64, scratch_operands = 0 : i64, tpu.core_type = #tpu.core_type<tc>, window_params = [{transform_indices = @transform_0, window_bounds = array<i64: 8, 8>}, {transform_indices = @transform_1, window_bounds = array<i64: 8, 1>}, {pipeline_mode = #tpu.pipeline_mode<synchronous>, transform_indices = @transform_2, window_bounds = array<i64: 10, 96>}, {pipeline_mode = #tpu.pipeline_mode<synchronous>, transform_indices = @transform_3, window_bounds = array<i64: 8, 32>}, {pipeline_mode = #tpu.pipeline_mode<synchronous>, transform_indices = @transform_4, window_bounds = array<i64: 32, 1152>}, {pipeline_mode = #tpu.pipeline_mode<synchronous>, transform_indices = @transform_5, window_bounds = array<i64: 1, 1280>}, {transform_indices = @transform_6, window_bounds = array<i64: 8, 8>}]} {
    %c0 = arith.constant 0 : index
    %c0_0 = arith.constant 0 : index
    %0 = vector.load %arg1[%c0, %c0_0] : memref<8x8xf32, #tpu.memory_space<vmem>>, vector<8x8xf32>
    %c0_1 = arith.constant 0 : index
    %c0_2 = arith.constant 0 : index
    %1 = vector.load %arg2[%c0_1, %c0_2] : memref<8x1xi32, #tpu.memory_space<vmem>>, vector<8x1xi32>
    %2 = tpu.iota {dimensions = array<i32: 1>} : vector<8x10xi32>
    %3 = vector.broadcast %1 : vector<8x1xi32> to vector<8x10xi32>
    %4 = arith.cmpi eq, %2, %3 : vector<8x10xi32>
    %5 = arith.extui %4 : vector<8x10xi1> to vector<8x10xi32>
    %6 = arith.sitofp %5 : vector<8x10xi32> to vector<8x10xf32>
    %c0_3 = arith.constant 0 : index
    %c0_4 = arith.constant 0 : index
    %7 = vector.load %arg3[%c0_3, %c0_4] : memref<10x96xf32, #tpu.memory_space<vmem>>, vector<10x96xf32>
    %cst = arith.constant dense<0.000000e+00> : vector<8x96xf32>
    %8 = tpu.matmul %6, %7, %cst {dimension_numbers = #tpu.dot_dimension_numbers<[1], [0], [0], [1], [0, 0, 1, 1], [], []>} : vector<8x10xf32>, vector<10x96xf32>, vector<8x96xf32> -> vector<8x96xf32>
    %9 = vector.extract_strided_slice %8 {offsets = [0, 0], sizes = [8, 32], strides = [1, 1]} : vector<8x96xf32> to vector<8x32xf32>
    %10 = vector.extract_strided_slice %8 {offsets = [0, 32], sizes = [8, 32], strides = [1, 1]} : vector<8x96xf32> to vector<8x32xf32>
    %11 = vector.extract_strided_slice %8 {offsets = [0, 64], sizes = [8, 32], strides = [1, 1]} : vector<8x96xf32> to vector<8x32xf32>
    %c0_5 = arith.constant 0 : index
    %c0_6 = arith.constant 0 : index
    %12 = vector.load %arg4[%c0_5, %c0_6] : memref<8x32xbf16, #tpu.memory_space<vmem>>, vector<8x32xbf16>
    %c0_7 = arith.constant 0 : index
    %c0_8 = arith.constant 0 : index
    %13 = vector.load %arg6[%c0_7, %c0_8] : memref<1x1280xf32, #tpu.memory_space<vmem>>, vector<1x32xf32>
    %14 = arith.truncf %0 : vector<8x8xf32> to vector<8x8xbf16>
    %cst_9 = arith.constant dense<0.000000e+00> : vector<8x32xf32>
    %15 = tpu.matmul %14, %12, %cst_9 {dimension_numbers = #tpu.dot_dimension_numbers<[1], [0], [0], [1], [0, 0, 1, 1], [], []>} : vector<8x8xbf16>, vector<8x32xbf16>, vector<8x32xf32> -> vector<8x32xf32>
    %16 = vector.broadcast %13 : vector<1x32xf32> to vector<8x32xf32>
    %17 = arith.addf %15, %16 : vector<8x32xf32>
    %18 = arith.mulf %9, %17 : vector<8x32xf32>
    %cst_10 = arith.constant 0.000000e+00 : f32
    %19 = vector.broadcast %cst_10 : f32 to vector<8x32xf32>
    %20 = arith.maximumf %18, %19 : vector<8x32xf32>
    %21 = math.absf %18 : vector<8x32xf32>
    %cst_11 = arith.constant 0.000000e+00 : f32
    %22 = vector.broadcast %cst_11 : f32 to vector<8x32xf32>
    %23 = arith.subf %22, %21 : vector<8x32xf32>
    %24 = math.exp %23 : vector<8x32xf32>
    %25 = math.log1p %24 : vector<8x32xf32>
    %26 = arith.addf %20, %25 : vector<8x32xf32>
    %c0_12 = arith.constant 0 : index
    %c0_13 = arith.constant 0 : index
    %27 = vector.load %arg5[%c0_12, %c0_13] : memref<32x1152xbf16, #tpu.memory_space<vmem>>, vector<32x32xbf16>
    %c0_14 = arith.constant 0 : index
    %c128 = arith.constant 128 : index
    %28 = vector.load %arg6[%c0_14, %c128] : memref<1x1280xf32, #tpu.memory_space<vmem>>, vector<1x32xf32>
    %29 = arith.truncf %26 : vector<8x32xf32> to vector<8x32xbf16>
    %cst_15 = arith.constant dense<0.000000e+00> : vector<8x32xf32>
    %30 = tpu.matmul %29, %27, %cst_15 {dimension_numbers = #tpu.dot_dimension_numbers<[1], [0], [0], [1], [0, 0, 1, 1], [], []>} : vector<8x32xbf16>, vector<32x32xbf16>, vector<8x32xf32> -> vector<8x32xf32>
    %31 = vector.broadcast %28 : vector<1x32xf32> to vector<8x32xf32>
    %32 = arith.addf %30, %31 : vector<8x32xf32>
    %33 = arith.mulf %10, %32 : vector<8x32xf32>
    %cst_16 = arith.constant 0.000000e+00 : f32
    %34 = vector.broadcast %cst_16 : f32 to vector<8x32xf32>
    %35 = arith.maximumf %33, %34 : vector<8x32xf32>
    %36 = math.absf %33 : vector<8x32xf32>
    %cst_17 = arith.constant 0.000000e+00 : f32
    %37 = vector.broadcast %cst_17 : f32 to vector<8x32xf32>
    %38 = arith.subf %37, %36 : vector<8x32xf32>
    %39 = math.exp %38 : vector<8x32xf32>
    %40 = math.log1p %39 : vector<8x32xf32>
    %41 = arith.addf %35, %40 : vector<8x32xf32>
    %c0_18 = arith.constant 0 : index
    %c128_19 = arith.constant 128 : index
    %42 = vector.load %arg5[%c0_18, %c128_19] : memref<32x1152xbf16, #tpu.memory_space<vmem>>, vector<32x32xbf16>
    %c0_20 = arith.constant 0 : index
    %c256 = arith.constant 256 : index
    %43 = vector.load %arg6[%c0_20, %c256] : memref<1x1280xf32, #tpu.memory_space<vmem>>, vector<1x32xf32>
    %44 = arith.truncf %41 : vector<8x32xf32> to vector<8x32xbf16>
    %cst_21 = arith.constant dense<0.000000e+00> : vector<8x32xf32>
    %45 = tpu.matmul %44, %42, %cst_21 {dimension_numbers = #tpu.dot_dimension_numbers<[1], [0], [0], [1], [0, 0, 1, 1], [], []>} : vector<8x32xbf16>, vector<32x32xbf16>, vector<8x32xf32> -> vector<8x32xf32>
    %46 = vector.broadcast %43 : vector<1x32xf32> to vector<8x32xf32>
    %47 = arith.addf %45, %46 : vector<8x32xf32>
    %48 = arith.mulf %11, %47 : vector<8x32xf32>
    %cst_22 = arith.constant 0.000000e+00 : f32
    %49 = vector.broadcast %cst_22 : f32 to vector<8x32xf32>
    %50 = arith.maximumf %48, %49 : vector<8x32xf32>
    %51 = math.absf %48 : vector<8x32xf32>
    %cst_23 = arith.constant 0.000000e+00 : f32
    %52 = vector.broadcast %cst_23 : f32 to vector<8x32xf32>
    %53 = arith.subf %52, %51 : vector<8x32xf32>
    %54 = math.exp %53 : vector<8x32xf32>
    %55 = math.log1p %54 : vector<8x32xf32>
    %56 = arith.addf %50, %55 : vector<8x32xf32>
    %c0_24 = arith.constant 0 : index
    %c256_25 = arith.constant 256 : index
    %57 = vector.load %arg5[%c0_24, %c256_25] : memref<32x1152xbf16, #tpu.memory_space<vmem>>, vector<32x64xbf16>
    %c0_26 = arith.constant 0 : index
    %c384 = arith.constant 384 : index
    %58 = vector.load %arg6[%c0_26, %c384] : memref<1x1280xf32, #tpu.memory_space<vmem>>, vector<1x64xf32>
    %59 = arith.truncf %56 : vector<8x32xf32> to vector<8x32xbf16>
    %cst_27 = arith.constant dense<0.000000e+00> : vector<8x64xf32>
    %60 = tpu.matmul %59, %57, %cst_27 {dimension_numbers = #tpu.dot_dimension_numbers<[1], [0], [0], [1], [0, 0, 1, 1], [], []>} : vector<8x32xbf16>, vector<32x64xbf16>, vector<8x64xf32> -> vector<8x64xf32>
    %61 = vector.broadcast %58 : vector<1x64xf32> to vector<8x64xf32>
    %62 = arith.addf %60, %61 : vector<8x64xf32>
    %cst_28 = arith.constant 0.000000e+00 : f32
    %63 = vector.broadcast %cst_28 : f32 to vector<8x64xf32>
    %64 = arith.maximumf %62, %63 : vector<8x64xf32>
    %65 = vector.extract_strided_slice %64 {offsets = [0, 0], sizes = [8, 32], strides = [1, 1]} : vector<8x64xf32> to vector<8x32xf32>
    %66 = vector.extract_strided_slice %64 {offsets = [0, 32], sizes = [8, 32], strides = [1, 1]} : vector<8x64xf32> to vector<8x32xf32>
    %c0_29 = arith.constant 0 : index
    %c384_30 = arith.constant 384 : index
    %67 = vector.load %arg5[%c0_29, %c384_30] : memref<32x1152xbf16, #tpu.memory_space<vmem>>, vector<32x32xbf16>
    %c0_31 = arith.constant 0 : index
    %c512 = arith.constant 512 : index
    %68 = vector.load %arg6[%c0_31, %c512] : memref<1x1280xf32, #tpu.memory_space<vmem>>, vector<1x32xf32>
    %69 = arith.truncf %65 : vector<8x32xf32> to vector<8x32xbf16>
    %cst_32 = arith.constant dense<0.000000e+00> : vector<8x32xf32>
    %70 = tpu.matmul %69, %67, %cst_32 {dimension_numbers = #tpu.dot_dimension_numbers<[1], [0], [0], [1], [0, 0, 1, 1], [], []>} : vector<8x32xbf16>, vector<32x32xbf16>, vector<8x32xf32> -> vector<8x32xf32>
    %71 = vector.broadcast %68 : vector<1x32xf32> to vector<8x32xf32>
    %72 = arith.addf %70, %71 : vector<8x32xf32>
    %c0_33 = arith.constant 0 : index
    %c512_34 = arith.constant 512 : index
    %73 = vector.load %arg5[%c0_33, %c512_34] : memref<32x1152xbf16, #tpu.memory_space<vmem>>, vector<32x5xbf16>
    %c0_35 = arith.constant 0 : index
    %c640 = arith.constant 640 : index
    %74 = vector.load %arg6[%c0_35, %c640] : memref<1x1280xf32, #tpu.memory_space<vmem>>, vector<1x5xf32>
    %75 = arith.truncf %72 : vector<8x32xf32> to vector<8x32xbf16>
    %cst_36 = arith.constant dense<0.000000e+00> : vector<8x5xf32>
    %76 = tpu.matmul %75, %73, %cst_36 {dimension_numbers = #tpu.dot_dimension_numbers<[1], [0], [0], [1], [0, 0, 1, 1], [], []>} : vector<8x32xbf16>, vector<32x5xbf16>, vector<8x5xf32> -> vector<8x5xf32>
    %77 = vector.broadcast %74 : vector<1x5xf32> to vector<8x5xf32>
    %78 = arith.addf %76, %77 : vector<8x5xf32>
    %79 = tpu.iota {dimensions = array<i32: 1>} : vector<1x5xi32>
    %c0_i32 = arith.constant 0 : i32
    %80 = vector.broadcast %c0_i32 : i32 to vector<1x5xi32>
    %81 = arith.cmpi sge, %79, %80 : vector<1x5xi32>
    %c2_i32 = arith.constant 2 : i32
    %82 = vector.broadcast %c2_i32 : i32 to vector<1x5xi32>
    %83 = arith.cmpi slt, %79, %82 : vector<1x5xi32>
    %84 = arith.andi %81, %83 : vector<1x5xi1>
    %c2_i32_37 = arith.constant 2 : i32
    %85 = vector.broadcast %c2_i32_37 : i32 to vector<1x5xi32>
    %86 = arith.cmpi sge, %79, %85 : vector<1x5xi32>
    %c5_i32 = arith.constant 5 : i32
    %87 = vector.broadcast %c5_i32 : i32 to vector<1x5xi32>
    %88 = arith.cmpi slt, %79, %87 : vector<1x5xi32>
    %89 = arith.andi %86, %88 : vector<1x5xi1>
    %cst_38 = arith.constant 0xFF800000 : f32
    %90 = vector.shape_cast %84 : vector<1x5xi1> to vector<1x5xi1>
    %91 = vector.broadcast %90 : vector<1x5xi1> to vector<8x5xi1>
    %92 = vector.broadcast %cst_38 : f32 to vector<8x5xf32>
    %93 = arith.select %91, %78, %92 : vector<8x5xi1>, vector<8x5xf32>
    %cst_39 = arith.constant dense<0xFF800000> : vector<8xf32>
    %94 = vector.multi_reduction <maximumf>, %93, %cst_39 [1] : vector<8x5xf32> to vector<8xf32>
    %95 = vector.shape_cast %94 : vector<8xf32> to vector<8x1xf32>
    %cst_40 = arith.constant 0.000000e+00 : f32
    %96 = vector.shape_cast %84 : vector<1x5xi1> to vector<1x5xi1>
    %97 = vector.broadcast %96 : vector<1x5xi1> to vector<8x5xi1>
    %98 = vector.shape_cast %95 : vector<8x1xf32> to vector<8x1xf32>
    %99 = vector.broadcast %98 : vector<8x1xf32> to vector<8x5xf32>
    %100 = vector.broadcast %cst_40 : f32 to vector<8x5xf32>
    %101 = arith.select %97, %99, %100 : vector<8x5xi1>, vector<8x5xf32>
    %cst_41 = arith.constant 0.000000e+00 : f32
    %102 = vector.broadcast %cst_41 : f32 to vector<8x5xf32>
    %103 = arith.addf %102, %101 : vector<8x5xf32>
    %cst_42 = arith.constant 0xFF800000 : f32
    %104 = vector.shape_cast %89 : vector<1x5xi1> to vector<1x5xi1>
    %105 = vector.broadcast %104 : vector<1x5xi1> to vector<8x5xi1>
    %106 = vector.broadcast %cst_42 : f32 to vector<8x5xf32>
    %107 = arith.select %105, %78, %106 : vector<8x5xi1>, vector<8x5xf32>
    %cst_43 = arith.constant dense<0xFF800000> : vector<8xf32>
    %108 = vector.multi_reduction <maximumf>, %107, %cst_43 [1] : vector<8x5xf32> to vector<8xf32>
    %109 = vector.shape_cast %108 : vector<8xf32> to vector<8x1xf32>
    %cst_44 = arith.constant 0.000000e+00 : f32
    %110 = vector.shape_cast %89 : vector<1x5xi1> to vector<1x5xi1>
    %111 = vector.broadcast %110 : vector<1x5xi1> to vector<8x5xi1>
    %112 = vector.shape_cast %109 : vector<8x1xf32> to vector<8x1xf32>
    %113 = vector.broadcast %112 : vector<8x1xf32> to vector<8x5xf32>
    %114 = vector.broadcast %cst_44 : f32 to vector<8x5xf32>
    %115 = arith.select %111, %113, %114 : vector<8x5xi1>, vector<8x5xf32>
    %116 = arith.addf %103, %115 : vector<8x5xf32>
    %117 = arith.subf %78, %116 : vector<8x5xf32>
    %118 = math.exp %117 : vector<8x5xf32>
    %cst_45 = arith.constant 0.000000e+00 : f32
    %119 = vector.shape_cast %84 : vector<1x5xi1> to vector<1x5xi1>
    %120 = vector.broadcast %119 : vector<1x5xi1> to vector<8x5xi1>
    %121 = vector.broadcast %cst_45 : f32 to vector<8x5xf32>
    %122 = arith.select %120, %118, %121 : vector<8x5xi1>, vector<8x5xf32>
    %cst_46 = arith.constant dense<0.000000e+00> : vector<8xf32>
    %123 = vector.multi_reduction <add>, %122, %cst_46 [1] : vector<8x5xf32> to vector<8xf32>
    %124 = vector.shape_cast %123 : vector<8xf32> to vector<8x1xf32>
    %125 = tpu.reciprocal %124 {approx = true} : vector<8x1xf32> -> vector<8x1xf32>
    %cst_47 = arith.constant 0.000000e+00 : f32
    %126 = vector.shape_cast %84 : vector<1x5xi1> to vector<1x5xi1>
    %127 = vector.broadcast %126 : vector<1x5xi1> to vector<8x5xi1>
    %128 = vector.shape_cast %125 : vector<8x1xf32> to vector<8x1xf32>
    %129 = vector.broadcast %128 : vector<8x1xf32> to vector<8x5xf32>
    %130 = vector.broadcast %cst_47 : f32 to vector<8x5xf32>
    %131 = arith.select %127, %129, %130 : vector<8x5xi1>, vector<8x5xf32>
    %cst_48 = arith.constant 0.000000e+00 : f32
    %132 = vector.broadcast %cst_48 : f32 to vector<8x5xf32>
    %133 = arith.addf %132, %131 : vector<8x5xf32>
    %cst_49 = arith.constant 0.000000e+00 : f32
    %134 = vector.shape_cast %89 : vector<1x5xi1> to vector<1x5xi1>
    %135 = vector.broadcast %134 : vector<1x5xi1> to vector<8x5xi1>
    %136 = vector.broadcast %cst_49 : f32 to vector<8x5xf32>
    %137 = arith.select %135, %118, %136 : vector<8x5xi1>, vector<8x5xf32>
    %cst_50 = arith.constant dense<0.000000e+00> : vector<8xf32>
    %138 = vector.multi_reduction <add>, %137, %cst_50 [1] : vector<8x5xf32> to vector<8xf32>
    %139 = vector.shape_cast %138 : vector<8xf32> to vector<8x1xf32>
    %140 = tpu.reciprocal %139 {approx = true} : vector<8x1xf32> -> vector<8x1xf32>
    %cst_51 = arith.constant 0.000000e+00 : f32
    %141 = vector.shape_cast %89 : vector<1x5xi1> to vector<1x5xi1>
    %142 = vector.broadcast %141 : vector<1x5xi1> to vector<8x5xi1>
    %143 = vector.shape_cast %140 : vector<8x1xf32> to vector<8x1xf32>
    %144 = vector.broadcast %143 : vector<8x1xf32> to vector<8x5xf32>
    %145 = vector.broadcast %cst_51 : f32 to vector<8x5xf32>
    %146 = arith.select %142, %144, %145 : vector<8x5xi1>, vector<8x5xf32>
    %147 = arith.addf %133, %146 : vector<8x5xf32>
    %148 = arith.mulf %118, %147 : vector<8x5xf32>
    %c0_52 = arith.constant 0 : index
    %c640_53 = arith.constant 640 : index
    %149 = vector.load %arg5[%c0_52, %c640_53] : memref<32x1152xbf16, #tpu.memory_space<vmem>>, vector<32x32xbf16>
    %c0_54 = arith.constant 0 : index
    %c768 = arith.constant 768 : index
    %150 = vector.load %arg6[%c0_54, %c768] : memref<1x1280xf32, #tpu.memory_space<vmem>>, vector<1x32xf32>
    %151 = arith.truncf %66 : vector<8x32xf32> to vector<8x32xbf16>
    %cst_55 = arith.constant dense<0.000000e+00> : vector<8x32xf32>
    %152 = tpu.matmul %151, %149, %cst_55 {dimension_numbers = #tpu.dot_dimension_numbers<[1], [0], [0], [1], [0, 0, 1, 1], [], []>} : vector<8x32xbf16>, vector<32x32xbf16>, vector<8x32xf32> -> vector<8x32xf32>
    %153 = vector.broadcast %150 : vector<1x32xf32> to vector<8x32xf32>
    %154 = arith.addf %152, %153 : vector<8x32xf32>
    %cst_56 = arith.constant 0.000000e+00 : f32
    %155 = vector.broadcast %cst_56 : f32 to vector<8x32xf32>
    %156 = arith.maximumf %154, %155 : vector<8x32xf32>
    %c0_57 = arith.constant 0 : index
    %c768_58 = arith.constant 768 : index
    %157 = vector.load %arg5[%c0_57, %c768_58] : memref<32x1152xbf16, #tpu.memory_space<vmem>>, vector<32x32xbf16>
    %c0_59 = arith.constant 0 : index
    %c896 = arith.constant 896 : index
    %158 = vector.load %arg6[%c0_59, %c896] : memref<1x1280xf32, #tpu.memory_space<vmem>>, vector<1x32xf32>
    %159 = arith.truncf %156 : vector<8x32xf32> to vector<8x32xbf16>
    %cst_60 = arith.constant dense<0.000000e+00> : vector<8x32xf32>
    %160 = tpu.matmul %159, %157, %cst_60 {dimension_numbers = #tpu.dot_dimension_numbers<[1], [0], [0], [1], [0, 0, 1, 1], [], []>} : vector<8x32xbf16>, vector<32x32xbf16>, vector<8x32xf32> -> vector<8x32xf32>
    %161 = vector.broadcast %158 : vector<1x32xf32> to vector<8x32xf32>
    %162 = arith.addf %160, %161 : vector<8x32xf32>
    %cst_61 = arith.constant 0.000000e+00 : f32
    %163 = vector.broadcast %cst_61 : f32 to vector<8x32xf32>
    %164 = arith.maximumf %162, %163 : vector<8x32xf32>
    %c0_62 = arith.constant 0 : index
    %c896_63 = arith.constant 896 : index
    %165 = vector.load %arg5[%c0_62, %c896_63] : memref<32x1152xbf16, #tpu.memory_space<vmem>>, vector<32x32xbf16>
    %c0_64 = arith.constant 0 : index
    %c1024 = arith.constant 1024 : index
    %166 = vector.load %arg6[%c0_64, %c1024] : memref<1x1280xf32, #tpu.memory_space<vmem>>, vector<1x32xf32>
    %167 = arith.truncf %164 : vector<8x32xf32> to vector<8x32xbf16>
    %cst_65 = arith.constant dense<0.000000e+00> : vector<8x32xf32>
    %168 = tpu.matmul %167, %165, %cst_65 {dimension_numbers = #tpu.dot_dimension_numbers<[1], [0], [0], [1], [0, 0, 1, 1], [], []>} : vector<8x32xbf16>, vector<32x32xbf16>, vector<8x32xf32> -> vector<8x32xf32>
    %169 = vector.broadcast %166 : vector<1x32xf32> to vector<8x32xf32>
    %170 = arith.addf %168, %169 : vector<8x32xf32>
    %c0_66 = arith.constant 0 : index
    %c1024_67 = arith.constant 1024 : index
    %171 = vector.load %arg5[%c0_66, %c1024_67] : memref<32x1152xbf16, #tpu.memory_space<vmem>>, vector<32x3xbf16>
    %c0_68 = arith.constant 0 : index
    %c1152 = arith.constant 1152 : index
    %172 = vector.load %arg6[%c0_68, %c1152] : memref<1x1280xf32, #tpu.memory_space<vmem>>, vector<1x3xf32>
    %173 = arith.truncf %170 : vector<8x32xf32> to vector<8x32xbf16>
    %cst_69 = arith.constant dense<0.000000e+00> : vector<8x3xf32>
    %174 = tpu.matmul %173, %171, %cst_69 {dimension_numbers = #tpu.dot_dimension_numbers<[1], [0], [0], [1], [0, 0, 1, 1], [], []>} : vector<8x32xbf16>, vector<32x3xbf16>, vector<8x3xf32> -> vector<8x3xf32>
    %175 = vector.broadcast %172 : vector<1x3xf32> to vector<8x3xf32>
    %176 = arith.addf %174, %175 : vector<8x3xf32>
    %177 = tpu.concatenate %176, %148 in 1 : vector<8x3xf32>, vector<8x5xf32> -> vector<8x8xf32>
    %c0_70 = arith.constant 0 : index
    %c0_71 = arith.constant 0 : index
    %178 = vector.load %arg7[%c0_70, %c0_71] : memref<8x8xf32, #tpu.memory_space<vmem>>, vector<8x8xf32>
    tpu.vector_store %arg7[%c0_70, %c0_71], %177 {strides = array<i32>} : memref<8x8xf32, #tpu.memory_space<vmem>>, vector<8x8xf32>,
    return
  }
  func.func @transform_0(%arg0: i32) -> (i32, i32) {
    %c0_i32 = arith.constant 0 : i32
    %c0_i32_0 = arith.constant 0 : i32
    return %arg0, %c0_i32 : i32, i32
  }
  func.func @transform_1(%arg0: i32) -> (i32, i32) {
    %c0_i32 = arith.constant 0 : i32
    %c0_i32_0 = arith.constant 0 : i32
    return %arg0, %c0_i32 : i32, i32
  }
  func.func @transform_2(%arg0: i32) -> (i32, i32) {
    %c0_i32 = arith.constant 0 : i32
    %c0_i32_0 = arith.constant 0 : i32
    %c0_i32_1 = arith.constant 0 : i32
    return %c0_i32, %c0_i32_0 : i32, i32
  }
  func.func @transform_3(%arg0: i32) -> (i32, i32) {
    %c0_i32 = arith.constant 0 : i32
    %c0_i32_0 = arith.constant 0 : i32
    %c0_i32_1 = arith.constant 0 : i32
    return %c0_i32, %c0_i32_0 : i32, i32
  }
  func.func @transform_4(%arg0: i32) -> (i32, i32) {
    %c0_i32 = arith.constant 0 : i32
    %c0_i32_0 = arith.constant 0 : i32
    %c0_i32_1 = arith.constant 0 : i32
    return %c0_i32, %c0_i32_0 : i32, i32
  }
  func.func @transform_5(%arg0: i32) -> (i32, i32) {
    %c0_i32 = arith.constant 0 : i32
    %c0_i32_0 = arith.constant 0 : i32
    %c0_i32_1 = arith.constant 0 : i32
    return %c0_i32, %c0_i32_0 : i32, i32
  }
  func.func @transform_6(%arg0: i32) -> (i32, i32) {
    %c0_i32 = arith.constant 0 : i32
    %c0_i32_0 = arith.constant 0 : i32
    return %arg0, %c0_i32 : i32, i32
  }
}

</mosaic_0001>

<llo_original>
// kernel: conditional_tabular_forward.1
$region0: #{conditional_tabular_forward.1}
  #allocation0 [shape = 'u32[]', space=smem, size = 0x4, offset = 0x4, fixed_abs, tag = 'smem constant byte address 0x4 - core index']
  #allocation1 [shape = 'u32[144,128]{1,0:T(1,128)}', space=vmem, size = 0x12000, scoped, tag = 'internal scratch']
  %s0 = inlined_call_operand.vmem [shape: f32[8,8], index: 0, kind: input, shape index: {}]
  %s1 = inlined_call_operand.vmem [shape: s32[8,1], index: 1, kind: input, shape index: {}]
  %s2 = inlined_call_operand.vmem [shape: f32[10,96], index: 2, kind: input, shape index: {}]
  %s3 = inlined_call_operand.vmem [shape: bf16[8,32], index: 3, kind: input, shape index: {}]
  %s4 = inlined_call_operand.vmem [shape: bf16[32,1152], index: 4, kind: input, shape index: {}]
  %s5 = inlined_call_operand.vmem [shape: f32[1,1280], index: 5, kind: input, shape index: {}]
  %s6 = inlined_call_operand.vmem [shape: f32[8,8], index: 6, kind: output, shape index: {}]
  %s7 = sld [smem:[#allocation0]]
  $region34: #{conditional_tabular_forward.1} parent=0
    _
  %s9 = ssub.s32 1, %s7
  %s10 = scalar_select 0, %s9, %s7
  // Predicated region
  $region2: #{conditional_tabular_forward.1} parent=0 // pred_check
    _
  $region3: #{conditional_tabular_forward.1} parent=0 // pred_check_branch
    %12 = sbr.rel (0) target = $region5
  $region4: #{conditional_tabular_forward.1} parent=0 // pred_region
    _
  $region5: #{conditional_tabular_forward.1} parent=0 // pred_fallthru
    _
  // Predicated region
  $region6: #{conditional_tabular_forward.1} parent=0 // pred_check
    _
  $region7: #{conditional_tabular_forward.1} parent=0 // pred_check_branch
    %14 = sbr.rel (0) target = $region9
  $region8: #{conditional_tabular_forward.1} parent=0 // pred_region
    _
  $region9: #{conditional_tabular_forward.1} parent=0 // pred_fallthru
    _
  // Predicated region
  $region10: #{conditional_tabular_forward.1} parent=0 // pred_check
    _
  $region11: #{conditional_tabular_forward.1} parent=0 // pred_check_branch
    %16 = sbr.rel (0) target = $region13
  $region12: #{conditional_tabular_forward.1} parent=0 // pred_region
    _
  $region13: #{conditional_tabular_forward.1} parent=0 // pred_fallthru
    _
  // Predicated region
  $region14: #{conditional_tabular_forward.1} parent=0 // pred_check
    _
  $region15: #{conditional_tabular_forward.1} parent=0 // pred_check_branch
    %18 = sbr.rel (0) target = $region17
  $region16: #{conditional_tabular_forward.1} parent=0 // pred_region
    _
  $region17: #{conditional_tabular_forward.1} parent=0 // pred_fallthru
    _
  // Predicated region
  $region18: #{conditional_tabular_forward.1} parent=0 // pred_check
    _
  $region19: #{conditional_tabular_forward.1} parent=0 // pred_check_branch
    %20 = sbr.rel (0) target = $region21
  $region20: #{conditional_tabular_forward.1} parent=0 // pred_region
    _
  $region21: #{conditional_tabular_forward.1} parent=0 // pred_fallthru
    _
  // Predicated region
  $region22: #{conditional_tabular_forward.1} parent=0 // pred_check
    _
  $region23: #{conditional_tabular_forward.1} parent=0 // pred_check_branch
    %22 = sbr.rel (0) target = $region25
  $region24: #{conditional_tabular_forward.1} parent=0 // pred_region
    _
  $region25: #{conditional_tabular_forward.1} parent=0 // pred_fallthru
    _
  %v24 = vld [vmem:[%s0] sm:$0xff]
  %v25 = vld [vmem:[%s1] sm:$0xff]
  %v26 = vlaneseq
  %v27 = vand.u32 %v26, 127
  %28 = vset.pattern.permute.xlu0 0
  %29 = vperm.xlu0 %28, %v25
  %v30 = vpop.permute.xlu0 %29
  %vm31 = vcmp.eq.s32.totalorder %v27, %v30
  %v32 = vsel %vm31, 1, 0
  %v33 = vcvt.s32.f32 %v32
  %v34 = vld [vmem:[%s2] sm:$0xff]
  %v35 = vld [vmem:[%s2 + $0x8] sm:$0x3]
  %vm36 = vcmask 80896
  %v38 = vsel %vm36, %v33, 0
  %vm40 = vcmask 1041408
  %v42 = vsel %vm40, %v35, 0
  %44 = vmatprep.subr.mxu0 0.0
  %45 = vmatpush1.msra.mxu0 0.0
  %46 = vmatprep.subr.mxu0 0.0
  %47 = vmatpush1.msra.mxu0 0.0
  %48 = vmatprep.subr.mxu0 0.0
  %49 = vmatpush1.msra.mxu0 0.0
  %50 = vmatprep.subr.mxu0 0.0
  %51 = vmatpush1.msra.mxu0 0.0
  %52 = vmatprep.subr.mxu0 0.0
  %53 = vmatpush1.msra.mxu0 0.0
  %54 = vmatprep.subr.mxu0 0.0
  %55 = vmatpush1.msra.mxu0 0.0
  %56 = vmatprep.subr.mxu0 0.0
  %57 = vmatpush1.msra.mxu0 0.0
  %58 = vmatprep.subr.mxu0 0.0
  %59 = vmatpush1.msra.mxu0 0.0
  %60 = vmatprep.subr.mxu0 0.0
  %61 = vmatpush1.msra.mxu0 0.0
  %62 = vmatprep.subr.mxu0 0.0
  %63 = vmatpush1.msra.mxu0 0.0
  %64 = vmatprep.subr.mxu0 0.0
  %65 = vmatpush1.msra.mxu0 0.0
  %66 = vmatprep.subr.mxu0 0.0
  %67 = vmatpush1.msra.mxu0 0.0
  %68 = vmatprep.subr.mxu0 0.0
  %69 = vmatpush1.msra.mxu0 0.0
  %70 = vmatprep.subr.mxu0 0.0
  %71 = vmatpush1.msra.mxu0 0.0
  %72 = vmatprep.subr.mxu0 0.0
  %73 = vmatpush1.msra.mxu0 %v42
  %74 = vmatprep.subr.mxu0 0.0
  %75 = vmatpush1.msra.mxu0 %v34
  %76 = vmatprep.subr.mxu0 0.0
  %77 = vmatpush2.msra.mxu0 0.0
  %78 = vmatprep.subr.mxu0 0.0
  %79 = vmatpush2.msra.mxu0 0.0
  %80 = vmatprep.subr.mxu0 0.0
  %81 = vmatpush2.msra.mxu0 0.0
  %82 = vmatprep.subr.mxu0 0.0
  %83 = vmatpush2.msra.mxu0 0.0
  %84 = vmatprep.subr.mxu0 0.0
  %85 = vmatpush2.msra.mxu0 0.0
  %86 = vmatprep.subr.mxu0 0.0
  %87 = vmatpush2.msra.mxu0 0.0
  %88 = vmatprep.subr.mxu0 0.0
  %89 = vmatpush2.msra.mxu0 0.0
  %90 = vmatprep.subr.mxu0 0.0
  %91 = vmatpush2.msra.mxu0 0.0
  %92 = vmatprep.subr.mxu0 0.0
  %93 = vmatpush2.msra.mxu0 0.0
  %94 = vmatprep.subr.mxu0 0.0
  %95 = vmatpush2.msra.mxu0 0.0
  %96 = vmatprep.subr.mxu0 0.0
  %97 = vmatpush2.msra.mxu0 0.0
  %98 = vmatprep.subr.mxu0 0.0
  %99 = vmatpush2.msra.mxu0 0.0
  %100 = vmatprep.subr.mxu0 0.0
  %101 = vmatpush2.msra.mxu0 0.0
  %102 = vmatprep.subr.mxu0 0.0
  %103 = vmatpush2.msra.mxu0 0.0
  %104 = vmatprep.subr.mxu0 0.0
  %105 = vmatpush2.msra.mxu0 0.0
  %106 = vmatprep.subr.mxu0 0.0
  %107 = vmatpush2.msra.mxu0 0.0
  %108 = vmatprep.mubr.f32.mxu0 0.0
  %109 = vmatmul.mubr.f32.gmra.mxu0 %v38
  %v110 = vpop.f32.mrf.mxu0
  %v111 = vadd.f32 0.0, %v110
  %v112 = vpop.f32.mrf.mxu0
  %113 = vdwg.mxu0
  %v114 = vld [vmem:[%s3] sm:$0xf]
  %v115 = vld [vmem:[%s5] sm:$0x1]
  %v116 = vpack.c.bf16 %v24, %v24
  %v118 = vlaneseq
  %v119 = vshrl.u32 %v118, 7
  %v120 = vsub.s32 0, %v119
  %v121 = vrot.slane %v115, %v120
  %vm123 = vcmask 64512
  %v125 = vsel %vm123, %v116, 0
  %vm127 = vcmask 1043456
  %v129 = vsel %vm127, %v114, 0
  %131 = vmatprep.subr.bf16.mxu0 0
  %132 = vmatpush1.bf16.msra.mxu0 0
  %133 = vmatprep.subr.bf16.mxu0 0
  %134 = vmatpush1.bf16.msra.mxu0 0
  %135 = vmatprep.subr.bf16.mxu0 0
  %136 = vmatpush1.bf16.msra.mxu0 0
  %137 = vmatprep.subr.bf16.mxu0 0
  %138 = vmatpush1.bf16.msra.mxu0 0
  %139 = vmatprep.subr.bf16.mxu0 0
  %140 = vmatpush1.bf16.msra.mxu0 0
  %141 = vmatprep.subr.bf16.mxu0 0
  %142 = vmatpush1.bf16.msra.mxu0 0
  %143 = vmatprep.subr.bf16.mxu0 0
  %144 = vmatpush1.bf16.msra.mxu0 0
  %145 = vmatprep.subr.bf16.mxu0 0
  %146 = vmatpush1.bf16.msra.mxu0 %v129
  %147 = vmatprep.subr.bf16.mxu0 0
  %148 = vmatpush2.bf16.msra.mxu0 0
  %149 = vmatprep.subr.bf16.mxu0 0
  %150 = vmatpush2.bf16.msra.mxu0 0
  %151 = vmatprep.subr.bf16.mxu0 0
  %152 = vmatpush2.bf16.msra.mxu0 0
  %153 = vmatprep.subr.bf16.mxu0 0
  %154 = vmatpush2.bf16.msra.mxu0 0
  %155 = vmatprep.subr.bf16.mxu0 0
  %156 = vmatpush2.bf16.msra.mxu0 0
  %157 = vmatprep.subr.bf16.mxu0 0
  %158 = vmatpush2.bf16.msra.mxu0 0
  %159 = vmatprep.subr.bf16.mxu0 0
  %160 = vmatpush2.bf16.msra.mxu0 0
  %161 = vmatprep.subr.bf16.mxu0 0
  %162 = vmatpush2.bf16.msra.mxu0 0
  %163 = vmatprep.mubr.bf16.mxu0 0
  %164 = vmatmul.mubr.bf16.gmra.mxu0 %v125
  %v165 = vpop.f32.mrf.mxu0
  %v166 = vadd.f32 %v121, %v165
  %v167 = vpop.f32.mrf.mxu0
  %v168 = vpop.f32.mrf.mxu0
  %v169 = vpop.f32.mrf.mxu0
  %170 = vdwg.mxu0
  %v171 = vmul.f32 %v111, %v166
  %v172 = vmax.f32 %v171, 0.0
  %v173 = vand.u32 2147483647, %v171
  %v174 = vsub.f32 0.0, %v173
  %v175 = vmul.f32 %v174, 1.442695
  %v176 = vpow.pop %v175
  %v177 = vadd.f32 %v176, 1.0
  %v178 = vlog2.pop %v177
  %v179 = vmul.f32 %v178, 0.6931472
  %v180 = vmul.f32 -0.5, %v176
  %v181 = vadd.f32 %v180, 1.0
  %v182 = vmul.f32 %v181, %v176
  %v183 = vand.u32 2147483647, %v176
  %vm184 = vcmp.lt.f32.partialorder %v183, 0.0004427343
  %v185 = vsel %vm184, %v182, %v179
  %v186 = vadd.f32 %v172, %v185
  %v187 = vld [vmem:[%s4] sm:$0xf]
  %v188 = vld [vmem:[%s4 + $0x24] sm:$0xf]
  %v189 = vld [vmem:[%s4 + $0x48] sm:$0xf]
  %v190 = vld [vmem:[%s4 + $0x6c] sm:$0xf]
  %v191 = vld [vmem:[%s5 + $0x1] sm:$0x1]
  %v192 = vpack.c.bf16 %v186, %v186
  %v194 = vlaneseq
  %v195 = vshrl.u32 %v194, 7
  %v196 = vsub.s32 0, %v195
  %v197 = vrot.slane %v191, %v196
  %v203 = vunpack.c.l.b16 %v187
  %v204 = vunpack.c.l.b16 %v188
  %v205 = vunpack.c.l.b16 %v189
  %v206 = vunpack.c.l.b16 %v190
  %v207 = vpack.c.b16 %v204, %v203
  %v208 = vpack.c.b16 %v206, %v205
  %vm211 = vcmask 261120
  %v213 = vsel %vm211, %v192, 0
  %215 = vmatprep.subr.bf16.mxu0 0
  %216 = vmatpush1.bf16.msra.mxu0 0
  %217 = vmatprep.subr.bf16.mxu0 0
  %218 = vmatpush1.bf16.msra.mxu0 0
  %219 = vmatprep.subr.bf16.mxu0 0
  %220 = vmatpush1.bf16.msra.mxu0 0
  %221 = vmatprep.subr.bf16.mxu0 0
  %222 = vmatpush1.bf16.msra.mxu0 0
  %223 = vmatprep.subr.bf16.mxu0 0
  %224 = vmatpush1.bf16.msra.mxu0 0
  %225 = vmatprep.subr.bf16.mxu0 0
  %226 = vmatpush1.bf16.msra.mxu0 0
  %227 = vmatprep.subr.bf16.mxu0 0
  %228 = vmatpush1.bf16.msra.mxu0 %v208
  %229 = vmatprep.subr.bf16.mxu0 0
  %230 = vmatpush1.bf16.msra.mxu0 %v207
  %231 = vmatprep.subr.bf16.mxu0 0
  %232 = vmatpush2.bf16.msra.mxu0 0
  %233 = vmatprep.subr.bf16.mxu0 0
  %234 = vmatpush2.bf16.msra.mxu0 0
  %235 = vmatprep.subr.bf16.mxu0 0
  %236 = vmatpush2.bf16.msra.mxu0 0
  %237 = vmatprep.subr.bf16.mxu0 0
  %238 = vmatpush2.bf16.msra.mxu0 0
  %239 = vmatprep.subr.bf16.mxu0 0
  %240 = vmatpush2.bf16.msra.mxu0 0
  %241 = vmatprep.subr.bf16.mxu0 0
  %242 = vmatpush2.bf16.msra.mxu0 0
  %243 = vmatprep.subr.bf16.mxu0 0
  %244 = vmatpush2.bf16.msra.mxu0 0
  %245 = vmatprep.subr.bf16.mxu0 0
  %246 = vmatpush2.bf16.msra.mxu0 0
  %247 = vmatprep.mubr.bf16.mxu0 0
  %248 = vmatmul.mubr.bf16.gmra.mxu0 %v213
  %v249 = vpop.f32.mrf.mxu0
  %v250 = vadd.f32 %v197, %v249
  %v251 = vpop.f32.mrf.mxu0
  %v252 = vpop.f32.mrf.mxu0
  %v253 = vpop.f32.mrf.mxu0
  %254 = vdwg.mxu0
  %256 = vrot.lane.b32.xlu0 %v250, 32
  %v257 = vpop.permute.xlu0 %256
  %v259 = vmul.f32 %v111, %v257
  %v260 = vmax.f32 %v259, 0.0
  %v261 = vand.u32 2147483647, %v259
  %v262 = vsub.f32 0.0, %v261
  %v263 = vmul.f32 %v262, 1.442695
  %v264 = vpow.pop %v263
  %v265 = vadd.f32 %v264, 1.0
  %v266 = vlog2.pop %v265
  %v267 = vmul.f32 %v266, 0.6931472
  %v268 = vmul.f32 -0.5, %v264
  %v269 = vadd.f32 %v268, 1.0
  %v270 = vmul.f32 %v269, %v264
  %v271 = vand.u32 2147483647, %v264
  %vm272 = vcmp.lt.f32.partialorder %v271, 0.0004427343
  %v273 = vsel %vm272, %v270, %v267
  %v274 = vadd.f32 %v260, %v273
  %v275 = vld [vmem:[%s4 + $0x4] sm:$0xf]
  %v276 = vld [vmem:[%s4 + $0x28] sm:$0xf]
  %v277 = vld [vmem:[%s4 + $0x4c] sm:$0xf]
  %v278 = vld [vmem:[%s4 + $0x70] sm:$0xf]
  %v279 = vld [vmem:[%s5 + $0x2] sm:$0x1]
  %v280 = vpack.c.bf16 %v274, %v274
  %v282 = vlaneseq
  %v283 = vshrl.u32 %v282, 7
  %v284 = vsub.s32 0, %v283
  %v285 = vrot.slane %v279, %v284
  %288 = vrot.lane.b32.xlu0 %v280, 96
  %v289 = vpop.permute.xlu0 %288
  %v294 = vunpack.c.l.b16 %v275
  %v295 = vunpack.c.l.b16 %v276
  %v296 = vunpack.c.l.b16 %v277
  %v297 = vunpack.c.l.b16 %v278
  %v298 = vpack.c.b16 %v295, %v294
  %v299 = vpack.c.b16 %v297, %v296
  %v303 = vsel %vm211, %v289, 0
  %305 = vmatprep.subr.bf16.mxu0 0
  %306 = vmatpush1.bf16.msra.mxu0 0
  %307 = vmatprep.subr.bf16.mxu0 0
  %308 = vmatpush1.bf16.msra.mxu0 0
  %309 = vmatprep.subr.bf16.mxu0 0
  %310 = vmatpush1.bf16.msra.mxu0 0
  %311 = vmatprep.subr.bf16.mxu0 0
  %312 = vmatpush1.bf16.msra.mxu0 0
  %313 = vmatprep.subr.bf16.mxu0 0
  %314 = vmatpush1.bf16.msra.mxu0 0
  %315 = vmatprep.subr.bf16.mxu0 0
  %316 = vmatpush1.bf16.msra.mxu0 0
  %317 = vmatprep.subr.bf16.mxu0 0
  %318 = vmatpush1.bf16.msra.mxu0 %v299
  %319 = vmatprep.subr.bf16.mxu0 0
  %320 = vmatpush1.bf16.msra.mxu0 %v298
  %321 = vmatprep.subr.bf16.mxu0 0
  %322 = vmatpush2.bf16.msra.mxu0 0
  %323 = vmatprep.subr.bf16.mxu0 0
  %324 = vmatpush2.bf16.msra.mxu0 0
  %325 = vmatprep.subr.bf16.mxu0 0
  %326 = vmatpush2.bf16.msra.mxu0 0
  %327 = vmatprep.subr.bf16.mxu0 0
  %328 = vmatpush2.bf16.msra.mxu0 0
  %329 = vmatprep.subr.bf16.mxu0 0
  %330 = vmatpush2.bf16.msra.mxu0 0
  %331 = vmatprep.subr.bf16.mxu0 0
  %332 = vmatpush2.bf16.msra.mxu0 0
  %333 = vmatprep.subr.bf16.mxu0 0
  %334 = vmatpush2.bf16.msra.mxu0 0
  %335 = vmatprep.subr.bf16.mxu0 0
  %336 = vmatpush2.bf16.msra.mxu0 0
  %337 = vmatprep.mubr.bf16.mxu0 0
  %338 = vmatmul.mubr.bf16.gmra.mxu0 %v303
  %v339 = vpop.f32.mrf.mxu0
  %v340 = vadd.f32 %v285, %v339
  %v341 = vpop.f32.mrf.mxu0
  %v342 = vpop.f32.mrf.mxu0
  %v343 = vpop.f32.mrf.mxu0
  %344 = vdwg.mxu0
  %346 = vrot.lane.b32.xlu0 %v340, 64
  %v347 = vpop.permute.xlu0 %346
  %v349 = vmul.f32 %v111, %v347
  %v350 = vmax.f32 %v349, 0.0
  %v351 = vand.u32 2147483647, %v349
  %v352 = vsub.f32 0.0, %v351
  %v353 = vmul.f32 %v352, 1.442695
  %v354 = vpow.pop %v353
  %v355 = vadd.f32 %v354, 1.0
  %v356 = vlog2.pop %v355
  %v357 = vmul.f32 %v356, 0.6931472
  %v358 = vmul.f32 -0.5, %v354
  %v359 = vadd.f32 %v358, 1.0
  %v360 = vmul.f32 %v359, %v354
  %v361 = vand.u32 2147483647, %v354
  %vm362 = vcmp.lt.f32.partialorder %v361, 0.0004427343
  %v363 = vsel %vm362, %v360, %v357
  %v364 = vadd.f32 %v350, %v363
  %v365 = vld [vmem:[%s4 + $0x8] sm:$0xf]
  %v366 = vld [vmem:[%s4 + $0x2c] sm:$0xf]
  %v367 = vld [vmem:[%s4 + $0x50] sm:$0xf]
  %v368 = vld [vmem:[%s4 + $0x74] sm:$0xf]
  %v369 = vld [vmem:[%s5 + $0x3] sm:$0x1]
  %v370 = vpack.c.bf16 %v364, %v364
  %v372 = vlaneseq
  %v373 = vshrl.u32 %v372, 7
  %v374 = vsub.s32 0, %v373
  %v375 = vrot.slane %v369, %v374
  %378 = vrot.lane.b32.xlu0 %v370, 64
  %v379 = vpop.permute.xlu0 %378
  %v384 = vunpack.c.l.b16 %v365
  %v385 = vunpack.c.l.b16 %v366
  %v386 = vunpack.c.l.b16 %v367
  %v387 = vunpack.c.l.b16 %v368
  %v388 = vpack.c.b16 %v385, %v384
  %v389 = vpack.c.b16 %v387, %v386
  %v393 = vsel %vm211, %v379, 0
  %395 = vmatprep.subr.bf16.mxu0 0
  %396 = vmatpush1.bf16.msra.mxu0 0
  %397 = vmatprep.subr.bf16.mxu0 0
  %398 = vmatpush1.bf16.msra.mxu0 0
  %399 = vmatprep.subr.bf16.mxu0 0
  %400 = vmatpush1.bf16.msra.mxu0 0
  %401 = vmatprep.subr.bf16.mxu0 0
  %402 = vmatpush1.bf16.msra.mxu0 0
  %403 = vmatprep.subr.bf16.mxu0 0
  %404 = vmatpush1.bf16.msra.mxu0 0
  %405 = vmatprep.subr.bf16.mxu0 0
  %406 = vmatpush1.bf16.msra.mxu0 0
  %407 = vmatprep.subr.bf16.mxu0 0
  %408 = vmatpush1.bf16.msra.mxu0 %v389
  %409 = vmatprep.subr.bf16.mxu0 0
  %410 = vmatpush1.bf16.msra.mxu0 %v388
  %411 = vmatprep.subr.bf16.mxu0 0
  %412 = vmatpush2.bf16.msra.mxu0 0
  %413 = vmatprep.subr.bf16.mxu0 0
  %414 = vmatpush2.bf16.msra.mxu0 0
  %415 = vmatprep.subr.bf16.mxu0 0
  %416 = vmatpush2.bf16.msra.mxu0 0
  %417 = vmatprep.subr.bf16.mxu0 0
  %418 = vmatpush2.bf16.msra.mxu0 0
  %419 = vmatprep.subr.bf16.mxu0 0
  %420 = vmatpush2.bf16.msra.mxu0 0
  %421 = vmatprep.subr.bf16.mxu0 0
  %422 = vmatpush2.bf16.msra.mxu0 0
  %423 = vmatprep.subr.bf16.mxu0 0
  %424 = vmatpush2.bf16.msra.mxu0 0
  %425 = vmatprep.subr.bf16.mxu0 0
  %426 = vmatpush2.bf16.msra.mxu0 0
  %427 = vmatprep.mubr.bf16.mxu0 0
  %428 = vmatmul.mubr.bf16.gmra.mxu0 %v393
  %v429 = vpop.f32.mrf.mxu0
  %v430 = vadd.f32 %v375, %v429
  %v431 = vpop.f32.mrf.mxu0
  %v432 = vpop.f32.mrf.mxu0
  %v433 = vpop.f32.mrf.mxu0
  %434 = vdwg.mxu0
  %v435 = vmax.f32 %v430, 0.0
  %v436 = vld [vmem:[%s4 + $0xc] sm:$0xf]
  %v437 = vld [vmem:[%s4 + $0x30] sm:$0xf]
  %v438 = vld [vmem:[%s4 + $0x54] sm:$0xf]
  %v439 = vld [vmem:[%s4 + $0x78] sm:$0xf]
  %v440 = vld [vmem:[%s5 + $0x4] sm:$0x1]
  %v441 = vpack.c.bf16 %v435, %v435
  %v443 = vlaneseq
  %v444 = vshrl.u32 %v443, 7
  %v445 = vsub.s32 0, %v444
  %v446 = vrot.slane %v440, %v445
  %v452 = vunpack.c.l.b16 %v436
  %v453 = vunpack.c.l.b16 %v437
  %v454 = vunpack.c.l.b16 %v438
  %v455 = vunpack.c.l.b16 %v439
  %v456 = vpack.c.b16 %v453, %v452
  %v457 = vpack.c.b16 %v455, %v454
  %v461 = vsel %vm211, %v441, 0
  %463 = vmatprep.subr.bf16.mxu0 0
  %464 = vmatpush1.bf16.msra.mxu0 0
  %465 = vmatprep.subr.bf16.mxu0 0
  %466 = vmatpush1.bf16.msra.mxu0 0
  %467 = vmatprep.subr.bf16.mxu0 0
  %468 = vmatpush1.bf16.msra.mxu0 0
  %469 = vmatprep.subr.bf16.mxu0 0
  %470 = vmatpush1.bf16.msra.mxu0 0
  %471 = vmatprep.subr.bf16.mxu0 0
  %472 = vmatpush1.bf16.msra.mxu0 0
  %473 = vmatprep.subr.bf16.mxu0 0
  %474 = vmatpush1.bf16.msra.mxu0 0
  %475 = vmatprep.subr.bf16.mxu0 0
  %476 = vmatpush1.bf16.msra.mxu0 %v457
  %477 = vmatprep.subr.bf16.mxu0 0
  %478 = vmatpush1.bf16.msra.mxu0 %v456
  %479 = vmatprep.subr.bf16.mxu0 0
  %480 = vmatpush2.bf16.msra.mxu0 0
  %481 = vmatprep.subr.bf16.mxu0 0
  %482 = vmatpush2.bf16.msra.mxu0 0
  %483 = vmatprep.subr.bf16.mxu0 0
  %484 = vmatpush2.bf16.msra.mxu0 0
  %485 = vmatprep.subr.bf16.mxu0 0
  %486 = vmatpush2.bf16.msra.mxu0 0
  %487 = vmatprep.subr.bf16.mxu0 0
  %488 = vmatpush2.bf16.msra.mxu0 0
  %489 = vmatprep.subr.bf16.mxu0 0
  %490 = vmatpush2.bf16.msra.mxu0 0
  %491 = vmatprep.subr.bf16.mxu0 0
  %492 = vmatpush2.bf16.msra.mxu0 0
  %493 = vmatprep.subr.bf16.mxu0 0
  %494 = vmatpush2.bf16.msra.mxu0 0
  %495 = vmatprep.mubr.bf16.mxu0 0
  %496 = vmatmul.mubr.bf16.gmra.mxu0 %v461
  %v497 = vpop.f32.mrf.mxu0
  %v498 = vadd.f32 %v446, %v497
  %v499 = vpop.f32.mrf.mxu0
  %v500 = vpop.f32.mrf.mxu0
  %v501 = vpop.f32.mrf.mxu0
  %502 = vdwg.mxu0
  %v503 = vld [vmem:[%s4 + $0x10] sm:$0xf]
  %v504 = vld [vmem:[%s4 + $0x34] sm:$0xf]
  %v505 = vld [vmem:[%s4 + $0x58] sm:$0xf]
  %v506 = vld [vmem:[%s4 + $0x7c] sm:$0xf]
  %v507 = vld [vmem:[%s5 + $0x5] sm:$0x1]
  %v508 = vpack.c.bf16 %v498, %v498
  %v510 = vlaneseq
  %v511 = vshrl.u32 %v510, 7
  %v512 = vsub.s32 0, %v511
  %v513 = vrot.slane %v507, %v512
  %v519 = vunpack.c.l.b16 %v503
  %v520 = vunpack.c.l.b16 %v504
  %v521 = vunpack.c.l.b16 %v505
  %v522 = vunpack.c.l.b16 %v506
  %v523 = vpack.c.b16 %v520, %v519
  %v524 = vpack.c.b16 %v522, %v521
  %v528 = vsel %vm211, %v508, 0
  %530 = vmatprep.subr.bf16.mxu0 0
  %531 = vmatpush1.bf16.msra.mxu0 0
  %532 = vmatprep.subr.bf16.mxu0 0
  %533 = vmatpush1.bf16.msra.mxu0 0
  %534 = vmatprep.subr.bf16.mxu0 0
  %535 = vmatpush1.bf16.msra.mxu0 0
  %536 = vmatprep.subr.bf16.mxu0 0
  %537 = vmatpush1.bf16.msra.mxu0 0
  %538 = vmatprep.subr.bf16.mxu0 0
  %539 = vmatpush1.bf16.msra.mxu0 0
  %540 = vmatprep.subr.bf16.mxu0 0
  %541 = vmatpush1.bf16.msra.mxu0 0
  %542 = vmatprep.subr.bf16.mxu0 0
  %543 = vmatpush1.bf16.msra.mxu0 %v524
  %544 = vmatprep.subr.bf16.mxu0 0
  %545 = vmatpush1.bf16.msra.mxu0 %v523
  %546 = vmatprep.subr.bf16.mxu0 0
  %547 = vmatpush2.bf16.msra.mxu0 0
  %548 = vmatprep.subr.bf16.mxu0 0
  %549 = vmatpush2.bf16.msra.mxu0 0
  %550 = vmatprep.subr.bf16.mxu0 0
  %551 = vmatpush2.bf16.msra.mxu0 0
  %552 = vmatprep.subr.bf16.mxu0 0
  %553 = vmatpush2.bf16.msra.mxu0 0
  %554 = vmatprep.subr.bf16.mxu0 0
  %555 = vmatpush2.bf16.msra.mxu0 0
  %556 = vmatprep.subr.bf16.mxu0 0
  %557 = vmatpush2.bf16.msra.mxu0 0
  %558 = vmatprep.subr.bf16.mxu0 0
  %559 = vmatpush2.bf16.msra.mxu0 0
  %560 = vmatprep.subr.bf16.mxu0 0
  %561 = vmatpush2.bf16.msra.mxu0 0
  %562 = vmatprep.mubr.bf16.mxu0 0
  %563 = vmatmul.mubr.bf16.gmra.mxu0 %v528
  %v564 = vpop.f32.mrf.mxu0
  %v565 = vadd.f32 %v513, %v564
  %v566 = vpop.f32.mrf.mxu0
  %v567 = vpop.f32.mrf.mxu0
  %v568 = vpop.f32.mrf.mxu0
  %569 = vdwg.mxu0
  %vm570 = vcmp.ge.s32.totalorder %v27, 0
  %vm571 = vcmp.lt.s32.totalorder %v27, 2
  %vm572 = vmand %vm570, %vm571
  %vm573 = vcmp.ge.s32.totalorder %v27, 2
  %vm574 = vcmp.lt.s32.totalorder %v27, 5
  %vm575 = vmand %vm573, %vm574
  %v576 = vsel %vm572, 1, 0
  %vm577 = vcmp.eq.s32.totalorder %v576, 1
  %v578 = vsel %vm577, %v565, -inf
  %vm579 = vcmask 39936
  %v580 = vsel %vm579, %v578, -inf
  %581 = vmax.xlane.f32.xlu0 %v580
  %v582 = vpop.xlane.xlu0 %581
  %v583 = vsel %vm577, %v582, 0.0
  %v584 = vadd.f32 %v583, 0.0
  %v585 = vsel %vm575, 1, 0
  %vm586 = vcmp.eq.s32.totalorder %v585, 1
  %v587 = vsel %vm586, %v565, -inf
  %v588 = vsel %vm579, %v587, -inf
  %589 = vmax.xlane.f32.xlu0 %v588
  %v590 = vpop.xlane.xlu0 %589
  %v591 = vsel %vm586, %v590, 0.0
  %v592 = vadd.f32 %v584, %v591
  %v593 = vsub.f32 %v565, %v592
  %v594 = vmul.f32 %v593, 1.442695
  %v595 = vpow.pop %v594
  %v596 = vsel %vm577, %v595, 0.0
  %v597 = vsel %vm579, %v596, 0.0
  %598 = vadd.xlane.f32.xlu0 %v597
  %v599 = vpop.xlane.xlu0 %598
  %v600 = vrcp.pop %v599
  %v601 = vsel %vm577, %v600, 0.0
  %v602 = vadd.f32 %v601, 0.0
  %v603 = vsel %vm586, %v595, 0.0
  %v604 = vsel %vm579, %v603, 0.0
  %605 = vadd.xlane.f32.xlu0 %v604
  %v606 = vpop.xlane.xlu0 %605
  %v607 = vrcp.pop %v606
  %v608 = vsel %vm586, %v607, 0.0
  %v609 = vadd.f32 %v602, %v608
  %v610 = vmul.f32 %v595, %v609
  %v611 = vld [vmem:[%s4 + $0x14] sm:$0xf]
  %v612 = vld [vmem:[%s4 + $0x38] sm:$0xf]
  %v613 = vld [vmem:[%s4 + $0x5c] sm:$0xf]
  %v614 = vld [vmem:[%s4 + $0x80] sm:$0xf]
  %v615 = vld [vmem:[%s5 + $0x6] sm:$0x1]
  %v617 = vlaneseq
  %v618 = vshrl.u32 %v617, 7
  %v619 = vsub.s32 0, %v618
  %v620 = vrot.slane %v615, %v619
  %623 = vrot.lane.b32.xlu0 %v441, 96
  %v624 = vpop.permute.xlu0 %623
  %v629 = vunpack.c.l.b16 %v611
  %v630 = vunpack.c.l.b16 %v612
  %v631 = vunpack.c.l.b16 %v613
  %v632 = vunpack.c.l.b16 %v614
  %v633 = vpack.c.b16 %v630, %v629
  %v634 = vpack.c.b16 %v632, %v631
  %v638 = vsel %vm211, %v624, 0
  %640 = vmatprep.subr.bf16.mxu0 0
  %641 = vmatpush1.bf16.msra.mxu0 0
  %642 = vmatprep.subr.bf16.mxu0 0
  %643 = vmatpush1.bf16.msra.mxu0 0
  %644 = vmatprep.subr.bf16.mxu0 0
  %645 = vmatpush1.bf16.msra.mxu0 0
  %646 = vmatprep.subr.bf16.mxu0 0
  %647 = vmatpush1.bf16.msra.mxu0 0
  %648 = vmatprep.subr.bf16.mxu0 0
  %649 = vmatpush1.bf16.msra.mxu0 0
  %650 = vmatprep.subr.bf16.mxu0 0
  %651 = vmatpush1.bf16.msra.mxu0 0
  %652 = vmatprep.subr.bf16.mxu0 0
  %653 = vmatpush1.bf16.msra.mxu0 %v634
  %654 = vmatprep.subr.bf16.mxu0 0
  %655 = vmatpush1.bf16.msra.mxu0 %v633
  %656 = vmatprep.subr.bf16.mxu0 0
  %657 = vmatpush2.bf16.msra.mxu0 0
  %658 = vmatprep.subr.bf16.mxu0 0
  %659 = vmatpush2.bf16.msra.mxu0 0
  %660 = vmatprep.subr.bf16.mxu0 0
  %661 = vmatpush2.bf16.msra.mxu0 0
  %662 = vmatprep.subr.bf16.mxu0 0
  %663 = vmatpush2.bf16.msra.mxu0 0
  %664 = vmatprep.subr.bf16.mxu0 0
  %665 = vmatpush2.bf16.msra.mxu0 0
  %666 = vmatprep.subr.bf16.mxu0 0
  %667 = vmatpush2.bf16.msra.mxu0 0
  %668 = vmatprep.subr.bf16.mxu0 0
  %669 = vmatpush2.bf16.msra.mxu0 0
  %670 = vmatprep.subr.bf16.mxu0 0
  %671 = vmatpush2.bf16.msra.mxu0 0
  %672 = vmatprep.mubr.bf16.mxu0 0
  %673 = vmatmul.mubr.bf16.gmra.mxu0 %v638
  %v674 = vpop.f32.mrf.mxu0
  %v675 = vadd.f32 %v620, %v674
  %v676 = vpop.f32.mrf.mxu0
  %v677 = vpop.f32.mrf.mxu0
  %v678 = vpop.f32.mrf.mxu0
  %679 = vdwg.mxu0
  %v680 = vmax.f32 %v675, 0.0
  %v681 = vld [vmem:[%s4 + $0x18] sm:$0xf]
  %v682 = vld [vmem:[%s4 + $0x3c] sm:$0xf]
  %v683 = vld [vmem:[%s4 + $0x60] sm:$0xf]
  %v684 = vld [vmem:[%s4 + $0x84] sm:$0xf]
  %v685 = vld [vmem:[%s5 + $0x7] sm:$0x1]
  %v686 = vpack.c.bf16 %v680, %v680
  %v688 = vlaneseq
  %v689 = vshrl.u32 %v688, 7
  %v690 = vsub.s32 0, %v689
  %v691 = vrot.slane %v685, %v690
  %v697 = vunpack.c.l.b16 %v681
  %v698 = vunpack.c.l.b16 %v682
  %v699 = vunpack.c.l.b16 %v683
  %v700 = vunpack.c.l.b16 %v684
  %v701 = vpack.c.b16 %v698, %v697
  %v702 = vpack.c.b16 %v700, %v699
  %v706 = vsel %vm211, %v686, 0
  %708 = vmatprep.subr.bf16.mxu0 0
  %709 = vmatpush1.bf16.msra.mxu0 0
  %710 = vmatprep.subr.bf16.mxu0 0
  %711 = vmatpush1.bf16.msra.mxu0 0
  %712 = vmatprep.subr.bf16.mxu0 0
  %713 = vmatpush1.bf16.msra.mxu0 0
  %714 = vmatprep.subr.bf16.mxu0 0
  %715 = vmatpush1.bf16.msra.mxu0 0
  %716 = vmatprep.subr.bf16.mxu0 0
  %717 = vmatpush1.bf16.msra.mxu0 0
  %718 = vmatprep.subr.bf16.mxu0 0
  %719 = vmatpush1.bf16.msra.mxu0 0
  %720 = vmatprep.subr.bf16.mxu0 0
  %721 = vmatpush1.bf16.msra.mxu0 %v702
  %722 = vmatprep.subr.bf16.mxu0 0
  %723 = vmatpush1.bf16.msra.mxu0 %v701
  %724 = vmatprep.subr.bf16.mxu0 0
  %725 = vmatpush2.bf16.msra.mxu0 0
  %726 = vmatprep.subr.bf16.mxu0 0
  %727 = vmatpush2.bf16.msra.mxu0 0
  %728 = vmatprep.subr.bf16.mxu0 0
  %729 = vmatpush2.bf16.msra.mxu0 0
  %730 = vmatprep.subr.bf16.mxu0 0
  %731 = vmatpush2.bf16.msra.mxu0 0
  %732 = vmatprep.subr.bf16.mxu0 0
  %733 = vmatpush2.bf16.msra.mxu0 0
  %734 = vmatprep.subr.bf16.mxu0 0
  %735 = vmatpush2.bf16.msra.mxu0 0
  %736 = vmatprep.subr.bf16.mxu0 0
  %737 = vmatpush2.bf16.msra.mxu0 0
  %738 = vmatprep.subr.bf16.mxu0 0
  %739 = vmatpush2.bf16.msra.mxu0 0
  %740 = vmatprep.mubr.bf16.mxu0 0
  %741 = vmatmul.mubr.bf16.gmra.mxu0 %v706
  %v742 = vpop.f32.mrf.mxu0
  %v743 = vadd.f32 %v691, %v742
  %v744 = vpop.f32.mrf.mxu0
  %v745 = vpop.f32.mrf.mxu0
  %v746 = vpop.f32.mrf.mxu0
  %747 = vdwg.mxu0
  %v748 = vmax.f32 %v743, 0.0
  %v749 = vld [vmem:[%s4 + $0x1c] sm:$0xf]
  %v750 = vld [vmem:[%s4 + $0x40] sm:$0xf]
  %v751 = vld [vmem:[%s4 + $0x64] sm:$0xf]
  %v752 = vld [vmem:[%s4 + $0x88] sm:$0xf]
  %v753 = vld [vmem:[%s5 + $0x8] sm:$0x1]
  %v754 = vpack.c.bf16 %v748, %v748
  %v756 = vlaneseq
  %v757 = vshrl.u32 %v756, 7
  %v758 = vsub.s32 0, %v757
  %v759 = vrot.slane %v753, %v758
  %v765 = vunpack.c.l.b16 %v749
  %v766 = vunpack.c.l.b16 %v750
  %v767 = vunpack.c.l.b16 %v751
  %v768 = vunpack.c.l.b16 %v752
  %v769 = vpack.c.b16 %v766, %v765
  %v770 = vpack.c.b16 %v768, %v767
  %v774 = vsel %vm211, %v754, 0
  %776 = vmatprep.subr.bf16.mxu0 0
  %777 = vmatpush1.bf16.msra.mxu0 0
  %778 = vmatprep.subr.bf16.mxu0 0
  %779 = vmatpush1.bf16.msra.mxu0 0
  %780 = vmatprep.subr.bf16.mxu0 0
  %781 = vmatpush1.bf16.msra.mxu0 0
  %782 = vmatprep.subr.bf16.mxu0 0
  %783 = vmatpush1.bf16.msra.mxu0 0
  %784 = vmatprep.subr.bf16.mxu0 0
  %785 = vmatpush1.bf16.msra.mxu0 0
  %786 = vmatprep.subr.bf16.mxu0 0
  %787 = vmatpush1.bf16.msra.mxu0 0
  %788 = vmatprep.subr.bf16.mxu0 0
  %789 = vmatpush1.bf16.msra.mxu0 %v770
  %790 = vmatprep.subr.bf16.mxu0 0
  %791 = vmatpush1.bf16.msra.mxu0 %v769
  %792 = vmatprep.subr.bf16.mxu0 0
  %793 = vmatpush2.bf16.msra.mxu0 0
  %794 = vmatprep.subr.bf16.mxu0 0
  %795 = vmatpush2.bf16.msra.mxu0 0
  %796 = vmatprep.subr.bf16.mxu0 0
  %797 = vmatpush2.bf16.msra.mxu0 0
  %798 = vmatprep.subr.bf16.mxu0 0
  %799 = vmatpush2.bf16.msra.mxu0 0
  %800 = vmatprep.subr.bf16.mxu0 0
  %801 = vmatpush2.bf16.msra.mxu0 0
  %802 = vmatprep.subr.bf16.mxu0 0
  %803 = vmatpush2.bf16.msra.mxu0 0
  %804 = vmatprep.subr.bf16.mxu0 0
  %805 = vmatpush2.bf16.msra.mxu0 0
  %806 = vmatprep.subr.bf16.mxu0 0
  %807 = vmatpush2.bf16.msra.mxu0 0
  %808 = vmatprep.mubr.bf16.mxu0 0
  %809 = vmatmul.mubr.bf16.gmra.mxu0 %v774
  %v810 = vpop.f32.mrf.mxu0
  %v811 = vadd.f32 %v759, %v810
  %v812 = vpop.f32.mrf.mxu0
  %v813 = vpop.f32.mrf.mxu0
  %v814 = vpop.f32.mrf.mxu0
  %815 = vdwg.mxu0
  %v816 = vld [vmem:[%s4 + $0x20] sm:$0xf]
  %v817 = vld [vmem:[%s4 + $0x44] sm:$0xf]
  %v818 = vld [vmem:[%s4 + $0x68] sm:$0xf]
  %v819 = vld [vmem:[%s4 + $0x8c] sm:$0xf]
  %v820 = vld [vmem:[%s5 + $0x9] sm:$0x1]
  %v821 = vpack.c.bf16 %v811, %v811
  %v823 = vlaneseq
  %v824 = vshrl.u32 %v823, 7
  %v825 = vsub.s32 0, %v824
  %v826 = vrot.slane %v820, %v825
  %v832 = vunpack.c.l.b16 %v816
  %v833 = vunpack.c.l.b16 %v817
  %v834 = vunpack.c.l.b16 %v818
  %v835 = vunpack.c.l.b16 %v819
  %v836 = vpack.c.b16 %v833, %v832
  %v837 = vpack.c.b16 %v835, %v834
  %v841 = vsel %vm211, %v821, 0
  %843 = vmatprep.subr.bf16.mxu0 0
  %844 = vmatpush1.bf16.msra.mxu0 0
  %845 = vmatprep.subr.bf16.mxu0 0
  %846 = vmatpush1.bf16.msra.mxu0 0
  %847 = vmatprep.subr.bf16.mxu0 0
  %848 = vmatpush1.bf16.msra.mxu0 0
  %849 = vmatprep.subr.bf16.mxu0 0
  %850 = vmatpush1.bf16.msra.mxu0 0
  %851 = vmatprep.subr.bf16.mxu0 0
  %852 = vmatpush1.bf16.msra.mxu0 0
  %853 = vmatprep.subr.bf16.mxu0 0
  %854 = vmatpush1.bf16.msra.mxu0 0
  %855 = vmatprep.subr.bf16.mxu0 0
  %856 = vmatpush1.bf16.msra.mxu0 %v837
  %857 = vmatprep.subr.bf16.mxu0 0
  %858 = vmatpush1.bf16.msra.mxu0 %v836
  %859 = vmatprep.subr.bf16.mxu0 0
  %860 = vmatpush2.bf16.msra.mxu0 0
  %861 = vmatprep.subr.bf16.mxu0 0
  %862 = vmatpush2.bf16.msra.mxu0 0
  %863 = vmatprep.subr.bf16.mxu0 0
  %864 = vmatpush2.bf16.msra.mxu0 0
  %865 = vmatprep.subr.bf16.mxu0 0
  %866 = vmatpush2.bf16.msra.mxu0 0
  %867 = vmatprep.subr.bf16.mxu0 0
  %868 = vmatpush2.bf16.msra.mxu0 0
  %869 = vmatprep.subr.bf16.mxu0 0
  %870 = vmatpush2.bf16.msra.mxu0 0
  %871 = vmatprep.subr.bf16.mxu0 0
  %872 = vmatpush2.bf16.msra.mxu0 0
  %873 = vmatprep.subr.bf16.mxu0 0
  %874 = vmatpush2.bf16.msra.mxu0 0
  %875 = vmatprep.mubr.bf16.mxu0 0
  %876 = vmatmul.mubr.bf16.gmra.mxu0 %v841
  %v877 = vpop.f32.mrf.mxu0
  %v878 = vadd.f32 %v826, %v877
  %v879 = vpop.f32.mrf.mxu0
  %v880 = vpop.f32.mrf.mxu0
  %v881 = vpop.f32.mrf.mxu0
  %882 = vdwg.mxu0
  %884 = vrot.lane.b32.xlu0 %v610, 3
  %v885 = vpop.permute.xlu0 %884
  %vm887 = vcmask 23552
  %v888 = vsel %vm887, %v878, %v885
  %889 = vst.msk [vmem:[%s6] sm:$0xff] %vm123, %v888
  // Predicated region
  $region26: #{conditional_tabular_forward.1} parent=0 // pred_check
    _
  $region27: #{conditional_tabular_forward.1} parent=0 // pred_check_branch
    %891 = sbr.rel (0) target = $region29
  $region28: #{conditional_tabular_forward.1} parent=0 // pred_region
    _
  $region29: #{conditional_tabular_forward.1} parent=0 // pred_fallthru
    _
  // Predicated region
  $region30: #{conditional_tabular_forward.1} parent=0 // pred_check
    _
  $region31: #{conditional_tabular_forward.1} parent=0 // pred_check_branch
    %893 = sbr.rel (0) target = $region33
  $region32: #{conditional_tabular_forward.1} parent=0 // pred_region
    _
  $region33: #{conditional_tabular_forward.1} parent=0 // pred_fallthru
    _

</llo_original>
